<compile_context>
chip_gen: v7x
topology: tpu7x:2x2x1
jax: 0.10.0
libtpu: 0.0.40
codegen_flags: <defaults>
</compile_context>

<pallas_src>
import math
from functools import partial

import jax
import jax.numpy as jnp
from jax.experimental import pallas as pl
from jax.experimental.pallas import tpu as pltpu

_LANE = 128                     # lane width / MXU-friendly padding target
_SUBLANE = 8                    # f32 sublane tile
_TB_CAP = 1024                  # batch-tile cap (perf review: 256 was far too small)
_SINGLE_BUFFER_BYTES = 2 << 20  # grid-invariant weights above this get Buffered(1)


def _round_up(x, m):
    return ((x + m - 1) // m) * m


def _bf16_activations_supported():
    """bf16 VPU/EUP exists on v6e/v7x; keep f32 tanh/exp elsewhere (e.g. v5e)."""
    try:
        kind = jax.devices()[0].device_kind.lower()
    except Exception:
        return False
    return ("v6" in kind) or ("v7" in kind)


def _resident_spec(a):
    """Spec for a grid-invariant (VMEM-resident) weight/bias.

    Large blocks are single-buffered: the block index never changes across the
    grid, so Buffered(1) halves their VMEM footprint at zero cost.
    """
    if int(a.size) * a.dtype.itemsize >= _SINGLE_BUFFER_BYTES:
        return pl.BlockSpec(a.shape, lambda i: (0, 0), pipeline_mode=pl.Buffered(1))
    return pl.BlockSpec(a.shape, lambda i: (0, 0))


def _policy_value_kernel(num_hidden, num_actions, act_bf16, *refs):
    """One batch-tile of the full forward pass, fully VMEM-resident.

    refs layout:
      [ s,                               # (TB, F)              f32  (unpadded features)
        W1, b1, ..., Wk, bk,             # (in, out_pad) bf16 / (1, out_pad) f32
        W_head, b_head,                  # fused policy+value head, lane-padded to 128
        out ]                            # (TB, 128) f32: cols [0,A)=probs, col A=value
    """
    s_ref = refs[0]
    layer_refs = refs[1:1 + 2 * num_hidden]
    wh_ref = refs[1 + 2 * num_hidden]
    bh_ref = refs[2 + 2 * num_hidden]
    out_ref = refs[-1]

    # (1, 128) policy-column mask, computed once and broadcast over batch rows.
    col = jax.lax.broadcasted_iota(jnp.int32, (1, _LANE), 1)
    is_policy = col < num_actions

    # --- fc_layers: Linear + Tanh (bf16 MXU operands, f32 accumulation) ---
    h = s_ref[...]
    if act_bf16:
        h = h.astype(jnp.bfloat16)
    for i in range(num_hidden):
        w = layer_refs[2 * i][...]                     # bf16 (in, out_pad)
        b = layer_refs[2 * i + 1][...]                 # f32  (1, out_pad)
        acc = jnp.dot(h.astype(jnp.bfloat16), w,
                      preferred_element_type=jnp.float32) + b
        if act_bf16:
            h = jnp.tanh(acc.astype(jnp.bfloat16))     # bf16 EUP on v6e/v7x
        else:
            h = jnp.tanh(acc)                          # f32 path (v5e: no bf16 EUP)

    # --- fused policy + value head: one lane-dense (H_pad, 128) matmul ---
    head = jnp.dot(h.astype(jnp.bfloat16), wh_ref[...],
                   preferred_element_type=jnp.float32) + bh_ref[...]

    # Stable softmax restricted to the real action columns (f32 throughout).
    logits = jnp.where(is_policy, head, -jnp.inf)
    logits = logits - jnp.max(logits, axis=-1, keepdims=True)
    e = jnp.exp(logits)                                # padded cols -> exp(-inf)=0
    # Exact reciprocal keeps sum(probs)==1 to f32 precision (PPO-safe).
    probs = e * pl.reciprocal(jnp.sum(e, axis=-1, keepdims=True), approx=False)

    # Cols [0,A): probs; col A: value; cols >A: exact zeros from zero-padded head.
    out_ref[...] = jnp.where(is_policy, probs, head)


def prepare_params(params):
    """One-time param prep: pad out-dims to 128, fuse heads, cast weights to bf16.

    The first layer's in-dim is kept at the TRUE feature count so the kernel can
    consume the unpadded observation block (no wrapper-side jnp.pad HBM pass).
    """
    hidden_ws, hidden_bs = params["hidden_ws"], params["hidden_bs"]
    wp, bp, wv, bv = params["wp"], params["bp"], params["wv"], params["bv"]
    num_actions = wp.shape[1]
    assert num_actions + 1 <= _LANE, "fused head assumes num_actions + 1 <= 128"

    padded_ws, padded_bs = [], []
    for li, (w, b) in enumerate(zip(hidden_ws, hidden_bs)):
        # Layer 0 keeps true in-dim (matches unpadded s); later layers' in-dims
        # match the 128-padded activations they consume.
        in_pad = w.shape[0] if li == 0 else _round_up(w.shape[0], _LANE)
        out_pad = _round_up(w.shape[1], _LANE)
        w_p = jnp.pad(w, ((0, in_pad - w.shape[0]), (0, out_pad - w.shape[1])))
        b_p = jnp.pad(b, ((0, 0), (0, out_pad - b.shape[1])))
        padded_ws.append(w_p.astype(jnp.bfloat16))
        padded_bs.append(b_p.astype(jnp.float32))

    h_pad = wp.shape[0] if len(hidden_ws) == 0 else _round_up(wp.shape[0], _LANE)
    w_head = jnp.zeros((h_pad, _LANE), jnp.float32)
    w_head = w_head.at[:wp.shape[0], :num_actions].set(wp)
    w_head = w_head.at[:wv.shape[0], num_actions].set(wv[:, 0])
    b_head = jnp.zeros((1, _LANE), jnp.float32)
    b_head = b_head.at[:, :num_actions].set(bp[0])
    b_head = b_head.at[:, num_actions].set(bv[0, 0])

    in_features = hidden_ws[0].shape[0] if hidden_ws else wp.shape[0]
    return {
        "hidden_ws": padded_ws,
        "hidden_bs": padded_bs,
        "w_head": w_head.astype(jnp.bfloat16),
        "b_head": b_head,
        "in_features": int(in_features),
        "num_actions": int(num_actions),
    }


def policy_value_forward(s, prep):
    """Flatten + one pallas_call over a batch grid. Returns (probs, value)."""
    batch = s.shape[0]
    feat = prep["in_features"]
    num_actions = prep["num_actions"]
    num_hidden = len(prep["hidden_ws"])

    s_flat = s.reshape(batch, -1).astype(jnp.float32)
    assert s_flat.shape[1] == feat

    # Batch tile: big enough to amortize the ~0.35us per-grid-step overhead,
    # ~ceil(batch/2) so moderate batches give >=2 grid steps for v7x megacore.
    # No batch padding: the last tile may be ragged (OOB reads are row-local
    # garbage, OOB stores are masked, and those rows are never returned).
    if batch <= _SUBLANE:
        tb = batch                                      # block dim == full array dim
    else:
        tb = min(_TB_CAP, _round_up(pl.cdiv(batch, 2), _SUBLANE))
    grid = (pl.cdiv(batch, tb),)

    act_bf16 = _bf16_activations_supported()

    inputs = [s_flat]
    in_specs = [pl.BlockSpec((tb, feat), lambda i: (i, 0))]
    for w, b in zip(prep["hidden_ws"], prep["hidden_bs"]):
        inputs += [w, b]
        in_specs += [_resident_spec(w), _resident_spec(b)]
    inputs += [prep["w_head"], prep["b_head"]]
    in_specs += [_resident_spec(prep["w_head"]), _resident_spec(prep["b_head"])]

    out_specs = pl.BlockSpec((tb, _LANE), lambda i: (i, 0))
    out_shape = jax.ShapeDtypeStruct((batch, _LANE), jnp.float32)

    # Advisory cost estimate for XLA's scheduler.
    dims = [feat] + [w.shape[1] for w in prep["hidden_ws"]]
    flops = sum(2 * batch * dims[i] * dims[i + 1] for i in range(num_hidden))
    flops += 2 * batch * dims[-1] * _LANE
    transcendentals = batch * (sum(dims[1:]) + _LANE)   # tanh + exp
    weight_bytes = sum(int(a.size) * a.dtype.itemsize for a in inputs[1:])
    bytes_accessed = s_flat.size * 4 + batch * _LANE * 4 + weight_bytes

    # Explicit VMEM budget: weights (<=2 buffers) + double-buffered s/out tiles
    # + per-layer activation headroom. Raised above v5e's 16 MiB default scoped
    # limit, capped below v7x's 64 MiB physical VMEM.
    max_width = max(dims + [_LANE])
    tile_bytes = 2 * (tb * feat * 4 + tb * _LANE * 4) + (num_hidden + 2) * tb * max_width * 4
    vmem_limit = int(min(max(2 * weight_bytes + tile_bytes + (4 << 20), 32 << 20), 60 << 20))

    out = pl.pallas_call(
        partial(_policy_value_kernel, num_hidden, num_actions, act_bf16),
        grid=grid,
        in_specs=in_specs,
        out_specs=out_specs,
        out_shape=out_shape,
        compiler_params=pltpu.CompilerParams(
            dimension_semantics=("parallel",),          # megacore sharding on v7x
            vmem_limit_bytes=vmem_limit),
        cost_estimate=pl.CostEstimate(
            flops=int(flops),
            transcendentals=int(transcendentals),
            bytes_accessed=int(bytes_accessed)),
    )(*inputs)

    probs = out[:batch, :num_actions]
    value = out[:batch, num_actions]
    return probs, value


def init_params(key, state_shape, mlp_layers, num_actions):
    """Deterministic init matching nn.Linear default (U[-1/sqrt(fan_in), +1/sqrt(fan_in)]).

    Weights stored (in_features, out_features) -- transposed vs PyTorch -- so the
    kernel does plain x @ W + b on the MXU. Biases kept 2D as (1, out).
    """
    layer_dims = [int(math.prod(state_shape))] + list(mlp_layers)

    def linear(key, fan_in, fan_out):
        kw, kb = jax.random.split(key)
        bound = 1.0 / math.sqrt(fan_in)
        w = jax.random.uniform(kw, (fan_in, fan_out), jnp.float32, -bound, bound)
        b = jax.random.uniform(kb, (1, fan_out), jnp.float32, -bound, bound)
        return w, b

    keys = jax.random.split(key, len(layer_dims) - 1 + 2)
    hidden_ws, hidden_bs = [], []
    for i in range(len(layer_dims) - 1):
        w, b = linear(keys[i], layer_dims[i], layer_dims[i + 1])
        hidden_ws.append(w)
        hidden_bs.append(b)

    wp, bp = linear(keys[-2], layer_dims[-1], num_actions)
    wv, bv = linear(keys[-1], layer_dims[-1], 1)

    return {"hidden_ws": hidden_ws, "hidden_bs": hidden_bs,
            "wp": wp, "bp": bp, "wv": wv, "bv": bv}


if __name__ == "__main__":
    # Shapes consistent with the module: state_shape=[4,16] -> 64 features,
    # two tanh hidden layers of 32, 8 actions, batch of 2.
    batch = 2
    state_shape = [4, 16]
    mlp_layers = [32, 32]
    num_actions = 8

    key = jax.random.PRNGKey(0)
    k_params, k_state = jax.random.split(key)

    params = init_params(k_params, state_shape, mlp_layers, num_actions)
    prep = prepare_params(params)
    s = jax.random.normal(k_state, (batch, *state_shape), jnp.float32)

    probs, value = policy_value_forward(s, prep)
    jax.block_until_ready((probs, value))

    # Pure-JAX f32 reference of the same forward pass.
    h_ref = s.reshape(batch, -1)
    for w, b in zip(params["hidden_ws"], params["hidden_bs"]):
        h_ref = jnp.tanh(h_ref @ w + b)
    logits_ref = h_ref @ params["wp"] + params["bp"]
    probs_ref = jax.nn.softmax(logits_ref, axis=-1)
    value_ref = (h_ref @ params["wv"] + params["bv"]).squeeze(-1)

    assert probs.shape == (batch, num_actions)
    assert value.shape == (batch,)
    # Matmul operands (and tanh on v6e/v7x) run in bf16 with f32 accumulation,
    # so compare against the f32 reference with a bf16-appropriate tolerance.
    # TODO(synk): keep the first-layer matmul in f32 if PPO ratios prove sensitive
    # to bf16 observation casting.
    assert jnp.allclose(probs, probs_ref, atol=5e-2)
    assert jnp.allclose(value, value_ref, atol=5e-2)
    # Normalization uses the exact reciprocal path -> f32-tight.
    assert jnp.allclose(jnp.sum(probs, axis=-1), 1.0, atol=1e-5)
    assert bool(jnp.all(probs >= 0.0))

    print("KERNEL_OK")
</pallas_src>

<mosaic_0001>
module attributes {stable_mosaic.version = 11 : i64} {
  func.func @_policy_value_kernel(%arg0: i32, %arg1: memref<2x64xf32, #tpu.memory_space<vmem>>, %arg2: memref<64x128xbf16, #tpu.memory_space<vmem>>, %arg3: memref<1x128xf32, #tpu.memory_space<vmem>>, %arg4: memref<128x128xbf16, #tpu.memory_space<vmem>>, %arg5: memref<1x128xf32, #tpu.memory_space<vmem>>, %arg6: memref<128x128xbf16, #tpu.memory_space<vmem>>, %arg7: memref<1x128xf32, #tpu.memory_space<vmem>>, %arg8: memref<2x128xf32, #tpu.memory_space<vmem>>) attributes {dimension_semantics = [#tpu.dimension_semantics<parallel>], iteration_bounds = array<i64: 1>, scalar_prefetch = 0 : i64, scratch_operands = 0 : i64, tpu.core_type = #tpu.core_type<tc>, window_params = [{transform_indices = @transform_0, window_bounds = array<i64: 2, 64>}, {pipeline_mode = #tpu.pipeline_mode<synchronous>, transform_indices = @transform_1, window_bounds = array<i64: 64, 128>}, {pipeline_mode = #tpu.pipeline_mode<synchronous>, transform_indices = @transform_2, window_bounds = array<i64: 1, 128>}, {pipeline_mode = #tpu.pipeline_mode<synchronous>, transform_indices = @transform_3, window_bounds = array<i64: 128, 128>}, {pipeline_mode = #tpu.pipeline_mode<synchronous>, transform_indices = @transform_4, window_bounds = array<i64: 1, 128>}, {pipeline_mode = #tpu.pipeline_mode<synchronous>, transform_indices = @transform_5, window_bounds = array<i64: 128, 128>}, {pipeline_mode = #tpu.pipeline_mode<synchronous>, transform_indices = @transform_6, window_bounds = array<i64: 1, 128>}, {transform_indices = @transform_7, window_bounds = array<i64: 2, 128>}]} {
    %0 = tpu.iota {dimensions = array<i32: 1>} : vector<1x128xi32>
    %c8_i32 = arith.constant 8 : i32
    %1 = vector.broadcast %c8_i32 : i32 to vector<1x128xi32>
    %2 = arith.cmpi slt, %0, %1 : vector<1x128xi32>
    %c0 = arith.constant 0 : index
    %c0_0 = arith.constant 0 : index
    %3 = vector.load %arg1[%c0, %c0_0] : memref<2x64xf32, #tpu.memory_space<vmem>>, vector<2x64xf32>
    %c0_1 = arith.constant 0 : index
    %c0_2 = arith.constant 0 : index
    %4 = vector.load %arg2[%c0_1, %c0_2] : memref<64x128xbf16, #tpu.memory_space<vmem>>, vector<64x128xbf16>
    %c0_3 = arith.constant 0 : index
    %c0_4 = arith.constant 0 : index
    %5 = vector.load %arg3[%c0_3, %c0_4] : memref<1x128xf32, #tpu.memory_space<vmem>>, vector<1x128xf32>
    %6 = arith.truncf %3 : vector<2x64xf32> to vector<2x64xbf16>
    %cst = arith.constant dense<0.000000e+00> : vector<2x128xf32>
    %7 = tpu.matmul %6, %4, %cst {dimension_numbers = #tpu.dot_dimension_numbers<[1], [0], [0], [1], [0, 0, 1, 1], [], []>} : vector<2x64xbf16>, vector<64x128xbf16>, vector<2x128xf32> -> vector<2x128xf32>
    %8 = vector.broadcast %5 : vector<1x128xf32> to vector<2x128xf32>
    %9 = arith.addf %7, %8 : vector<2x128xf32>
    %10 = math.tanh %9 : vector<2x128xf32>
    %c0_5 = arith.constant 0 : index
    %c0_6 = arith.constant 0 : index
    %11 = vector.load %arg4[%c0_5, %c0_6] : memref<128x128xbf16, #tpu.memory_space<vmem>>, vector<128x128xbf16>
    %c0_7 = arith.constant 0 : index
    %c0_8 = arith.constant 0 : index
    %12 = vector.load %arg5[%c0_7, %c0_8] : memref<1x128xf32, #tpu.memory_space<vmem>>, vector<1x128xf32>
    %13 = arith.truncf %10 : vector<2x128xf32> to vector<2x128xbf16>
    %cst_9 = arith.constant dense<0.000000e+00> : vector<2x128xf32>
    %14 = tpu.matmul %13, %11, %cst_9 {dimension_numbers = #tpu.dot_dimension_numbers<[1], [0], [0], [1], [0, 0, 1, 1], [], []>} : vector<2x128xbf16>, vector<128x128xbf16>, vector<2x128xf32> -> vector<2x128xf32>
    %15 = vector.broadcast %12 : vector<1x128xf32> to vector<2x128xf32>
    %16 = arith.addf %14, %15 : vector<2x128xf32>
    %17 = math.tanh %16 : vector<2x128xf32>
    %18 = arith.truncf %17 : vector<2x128xf32> to vector<2x128xbf16>
    %c0_10 = arith.constant 0 : index
    %c0_11 = arith.constant 0 : index
    %19 = vector.load %arg6[%c0_10, %c0_11] : memref<128x128xbf16, #tpu.memory_space<vmem>>, vector<128x128xbf16>
    %cst_12 = arith.constant dense<0.000000e+00> : vector<2x128xf32>
    %20 = tpu.matmul %18, %19, %cst_12 {dimension_numbers = #tpu.dot_dimension_numbers<[1], [0], [0], [1], [0, 0, 1, 1], [], []>} : vector<2x128xbf16>, vector<128x128xbf16>, vector<2x128xf32> -> vector<2x128xf32>
    %c0_13 = arith.constant 0 : index
    %c0_14 = arith.constant 0 : index
    %21 = vector.load %arg7[%c0_13, %c0_14] : memref<1x128xf32, #tpu.memory_space<vmem>>, vector<1x128xf32>
    %22 = vector.broadcast %21 : vector<1x128xf32> to vector<2x128xf32>
    %23 = arith.addf %20, %22 : vector<2x128xf32>
    %cst_15 = arith.constant 0xFF800000 : f32
    %24 = vector.shape_cast %2 : vector<1x128xi1> to vector<1x128xi1>
    %25 = vector.broadcast %24 : vector<1x128xi1> to vector<2x128xi1>
    %26 = vector.broadcast %cst_15 : f32 to vector<2x128xf32>
    %27 = arith.select %25, %23, %26 : vector<2x128xi1>, vector<2x128xf32>
    %cst_16 = arith.constant dense<0xFF800000> : vector<2xf32>
    %28 = vector.multi_reduction <maximumf>, %27, %cst_16 [1] : vector<2x128xf32> to vector<2xf32>
    %29 = vector.shape_cast %28 : vector<2xf32> to vector<2x1xf32>
    %30 = vector.broadcast %29 : vector<2x1xf32> to vector<2x128xf32>
    %31 = arith.subf %27, %30 : vector<2x128xf32>
    %32 = math.exp %31 : vector<2x128xf32>
    %cst_17 = arith.constant dense<0.000000e+00> : vector<2xf32>
    %33 = vector.multi_reduction <add>, %32, %cst_17 [1] : vector<2x128xf32> to vector<2xf32>
    %34 = vector.shape_cast %33 : vector<2xf32> to vector<2x1xf32>
    %35 = tpu.reciprocal %34 : vector<2x1xf32> -> vector<2x1xf32>
    %36 = vector.broadcast %35 : vector<2x1xf32> to vector<2x128xf32>
    %37 = arith.mulf %32, %36 : vector<2x128xf32>
    %38 = vector.shape_cast %2 : vector<1x128xi1> to vector<1x128xi1>
    %39 = vector.broadcast %38 : vector<1x128xi1> to vector<2x128xi1>
    %40 = arith.select %39, %37, %23 : vector<2x128xi1>, vector<2x128xf32>
    %c0_18 = arith.constant 0 : index
    %c0_19 = arith.constant 0 : index
    %41 = vector.load %arg8[%c0_18, %c0_19] : memref<2x128xf32, #tpu.memory_space<vmem>>, vector<2x128xf32>
    tpu.vector_store %arg8[%c0_18, %c0_19], %40 {strides = array<i32>} : memref<2x128xf32, #tpu.memory_space<vmem>>, vector<2x128xf32>,
    return
  }
  func.func @transform_0(%arg0: i32) -> (i32, i32) {
    %c0_i32 = arith.constant 0 : i32
    %c0_i32_0 = arith.constant 0 : i32
    return %arg0, %c0_i32 : i32, i32
  }
  func.func @transform_1(%arg0: i32) -> (i32, i32) {
    %c0_i32 = arith.constant 0 : i32
    %c0_i32_0 = arith.constant 0 : i32
    %c0_i32_1 = arith.constant 0 : i32
    return %c0_i32, %c0_i32_0 : i32, i32
  }
  func.func @transform_2(%arg0: i32) -> (i32, i32) {
    %c0_i32 = arith.constant 0 : i32
    %c0_i32_0 = arith.constant 0 : i32
    %c0_i32_1 = arith.constant 0 : i32
    return %c0_i32, %c0_i32_0 : i32, i32
  }
  func.func @transform_3(%arg0: i32) -> (i32, i32) {
    %c0_i32 = arith.constant 0 : i32
    %c0_i32_0 = arith.constant 0 : i32
    %c0_i32_1 = arith.constant 0 : i32
    return %c0_i32, %c0_i32_0 : i32, i32
  }
  func.func @transform_4(%arg0: i32) -> (i32, i32) {
    %c0_i32 = arith.constant 0 : i32
    %c0_i32_0 = arith.constant 0 : i32
    %c0_i32_1 = arith.constant 0 : i32
    return %c0_i32, %c0_i32_0 : i32, i32
  }
  func.func @transform_5(%arg0: i32) -> (i32, i32) {
    %c0_i32 = arith.constant 0 : i32
    %c0_i32_0 = arith.constant 0 : i32
    %c0_i32_1 = arith.constant 0 : i32
    return %c0_i32, %c0_i32_0 : i32, i32
  }
  func.func @transform_6(%arg0: i32) -> (i32, i32) {
    %c0_i32 = arith.constant 0 : i32
    %c0_i32_0 = arith.constant 0 : i32
    %c0_i32_1 = arith.constant 0 : i32
    return %c0_i32, %c0_i32_0 : i32, i32
  }
  func.func @transform_7(%arg0: i32) -> (i32, i32) {
    %c0_i32 = arith.constant 0 : i32
    %c0_i32_0 = arith.constant 0 : i32
    return %arg0, %c0_i32 : i32, i32
  }
}

</mosaic_0001>

<llo_original>
// kernel: tpu_custom_call.1
$region0: #{tpu_custom_call.1}
  #allocation0 [shape = 'u32[]', space=smem, size = 0x4, offset = 0x4, fixed_abs, tag = 'smem constant byte address 0x4 - core index']
  #allocation1 [shape = 'u32[144,128]{1,0:T(1,128)}', space=vmem, size = 0x12000, scoped, tag = 'internal scratch']
  %s0 = inlined_call_operand.hbm [shape: f32[2,64], index: 0, kind: input, shape index: {}]
  %s1 = inlined_call_operand.hbm [shape: bf16[64,128], index: 1, kind: input, shape index: {}]
  %s2 = inlined_call_operand.vmem [shape: f32[1,128], index: 2, kind: input, shape index: {}]
  %s3 = inlined_call_operand.hbm [shape: bf16[128,128], index: 3, kind: input, shape index: {}]
  %s4 = inlined_call_operand.vmem [shape: f32[1,128], index: 4, kind: input, shape index: {}]
  %s5 = inlined_call_operand.hbm [shape: bf16[128,128], index: 5, kind: input, shape index: {}]
  %s6 = inlined_call_operand.vmem [shape: f32[1,128], index: 6, kind: input, shape index: {}]
  %s7 = inlined_call_operand.hbm [shape: f32[2,128], index: 7, kind: output, shape index: {}]
  %s8 = sld [smem:[#allocation0]]
  $region54: #{tpu_custom_call.1} parent=0
    _
  %s10 = ssub.s32 1, %s8
  %s11 = scalar_select 0, %s10, %s8
  $region1: #{tpu_custom_call.1} parent=0
    #allocation2 [shape = 'u8[1024]{0}', space=vmem, size = 0x400, scoped, tag = 'input window, operand 0, single buffered']
    #allocation3 [shape = 's32[1]{0}', space=sflag, size = 0x4, scoped, tag = 'scoped memory for tpu_custom_call.1']
    #allocation4 [shape = 's32[1]{0}', space=sflag, size = 0x4, scoped, tag = 'scoped memory for tpu_custom_call.1']
    #allocation5 [shape = 'u8[16384]{0}', space=vmem, size = 0x4000, scoped, tag = 'input window, operand 1, single buffered']
    #allocation6 [shape = 's32[1]{0}', space=sflag, size = 0x4, scoped, tag = 'scoped memory for tpu_custom_call.1']
    #allocation7 [shape = 'u8[32768]{0}', space=vmem, size = 0x8000, scoped, tag = 'input window, operand 3, single buffered']
    #allocation8 [shape = 'u8[32768]{0}', space=vmem, size = 0x8000, scoped, tag = 'input window, operand 5, single buffered']
    #allocation9 [shape = 's32[1]{0}', space=sflag, size = 0x4, scoped, tag = 'scoped memory for tpu_custom_call.1']
    #allocation10 [shape = 'u8[1024]{0}', space=vmem, size = 0x400, scoped, tag = 'output window, operand 0, single buffered']
    %12 = vsyncpa [#allocation3], 0
    %13 = vsyncpa [#allocation6], 0
    %14 = vsyncpa [#allocation9], 0
    %15 = vsyncpa [#allocation4], 0
    // Predicated region
    $region2: #{tpu_custom_call.1} parent=1 // pred_check
      _
    $region3: #{tpu_custom_call.1} parent=1 // pred_check_branch
      %17 = sbr.rel (0) target = $region5
    $region4: #{tpu_custom_call.1} parent=1 // pred_region
      %s19 = ssub.s32 32, 32
      %20 = vsyncadd [#allocation3], %s19
      %s22 = sshll.u32 [#allocation2], 4
      %s23 = int_to_ptr.vmem [resolvable:$true] %s22
      %25 = dma.hbm_to_vmem [thread:$0]  %s0, 32, %s23, [#allocation3]
    $region5: #{tpu_custom_call.1} parent=1 // pred_fallthru
      _
    // Predicated region
    $region6: #{tpu_custom_call.1} parent=1 // pred_check
      _
    $region7: #{tpu_custom_call.1} parent=1 // pred_check_branch
      %27 = sbr.rel (0) target = $region9
    $region8: #{tpu_custom_call.1} parent=1 // pred_region
      %s29 = ssub.s32 512, 512
      %30 = vsyncadd [#allocation6], %s29
      %s31 = sshll.u32 [#allocation5], 4
      %s32 = int_to_ptr.vmem [resolvable:$true] %s31
      %37 = dma.hbm_to_vmem [thread:$0]  %s1, 512, %s32, [#allocation6], 64, 64, 4
    $region9: #{tpu_custom_call.1} parent=1 // pred_fallthru
      _
    // Predicated region
    $region10: #{tpu_custom_call.1} parent=1 // pred_check
      _
    $region11: #{tpu_custom_call.1} parent=1 // pred_check_branch
      %39 = sbr.rel (0) target = $region13
    $region12: #{tpu_custom_call.1} parent=1 // pred_region
      _
    $region13: #{tpu_custom_call.1} parent=1 // pred_fallthru
      _
    // Predicated region
    $region14: #{tpu_custom_call.1} parent=1 // pred_check
      _
    $region15: #{tpu_custom_call.1} parent=1 // pred_check_branch
      %41 = sbr.rel (0) target = $region17
    $region16: #{tpu_custom_call.1} parent=1 // pred_region
      %s43 = ssub.s32 1024, 1024
      %44 = vsyncadd [#allocation6], %s43
      %s45 = sshll.u32 [#allocation7], 4
      %s46 = int_to_ptr.vmem [resolvable:$true] %s45
      %51 = dma.hbm_to_vmem [thread:$0]  %s3, 1024, %s46, [#allocation6], 64, 64, 4
    $region17: #{tpu_custom_call.1} parent=1 // pred_fallthru
      _
    // Predicated region
    $region18: #{tpu_custom_call.1} parent=1 // pred_check
      _
    $region19: #{tpu_custom_call.1} parent=1 // pred_check_branch
      %53 = sbr.rel (0) target = $region21
    $region20: #{tpu_custom_call.1} parent=1 // pred_region
      _
    $region21: #{tpu_custom_call.1} parent=1 // pred_fallthru
      _
    // Predicated region
    $region22: #{tpu_custom_call.1} parent=1 // pred_check
      _
    $region23: #{tpu_custom_call.1} parent=1 // pred_check_branch
      %55 = sbr.rel (0) target = $region25
    $region24: #{tpu_custom_call.1} parent=1 // pred_region
      %s57 = ssub.s32 1024, 1024
      %58 = vsyncadd [#allocation9], %s57
      %s59 = sshll.u32 [#allocation8], 4
      %s60 = int_to_ptr.vmem [resolvable:$true] %s59
      %65 = dma.hbm_to_vmem [thread:$0]  %s5, 1024, %s60, [#allocation9], 64, 64, 4
    $region25: #{tpu_custom_call.1} parent=1 // pred_fallthru
      _
    // Predicated region
    $region26: #{tpu_custom_call.1} parent=1 // pred_check
      _
    $region27: #{tpu_custom_call.1} parent=1 // pred_check_branch
      %67 = sbr.rel (0) target = $region29
    $region28: #{tpu_custom_call.1} parent=1 // pred_region
      _
    $region29: #{tpu_custom_call.1} parent=1 // pred_fallthru
      _
    // Predicated region
    $region30: #{tpu_custom_call.1} parent=1 // pred_check
      _
    $region31: #{tpu_custom_call.1} parent=1 // pred_check_branch
      %69 = sbr.rel (0) target = $region33
    $region32: #{tpu_custom_call.1} parent=1 // pred_region
      %70 = dma.done [#allocation3], 32
    $region33: #{tpu_custom_call.1} parent=1 // pred_fallthru
      _
    // Predicated region
    $region34: #{tpu_custom_call.1} parent=1 // pred_check
      _
    $region35: #{tpu_custom_call.1} parent=1 // pred_check_branch
      %72 = sbr.rel (0) target = $region37
    $region36: #{tpu_custom_call.1} parent=1 // pred_region
      %73 = dma.done [#allocation6], 512
    $region37: #{tpu_custom_call.1} parent=1 // pred_fallthru
      _
    // Predicated region
    $region38: #{tpu_custom_call.1} parent=1 // pred_check
      _
    $region39: #{tpu_custom_call.1} parent=1 // pred_check_branch
      %75 = sbr.rel (0) target = $region41
    $region40: #{tpu_custom_call.1} parent=1 // pred_region
      %76 = dma.done [#allocation6], 1024
    $region41: #{tpu_custom_call.1} parent=1 // pred_fallthru
      _
    // Predicated region
    $region42: #{tpu_custom_call.1} parent=1 // pred_check
      _
    $region43: #{tpu_custom_call.1} parent=1 // pred_check_branch
      %78 = sbr.rel (0) target = $region45
    $region44: #{tpu_custom_call.1} parent=1 // pred_region
      %79 = dma.done [#allocation9], 1024
    $region45: #{tpu_custom_call.1} parent=1 // pred_fallthru
      _
    %v81 = vlaneseq
    %v82 = vand.u32 %v81, 127
    %vm83 = vcmp.lt.s32.totalorder %v82, 8
    %v84 = vld [vmem:[#allocation2] sm:$0x3]
    %v85 = vld [vmem:[#allocation5] sm:$0xf]
    %v86 = vld [vmem:[#allocation5 + $0x4] sm:$0xf]
    %v87 = vld [vmem:[#allocation5 + $0x8] sm:$0xf]
    %v88 = vld [vmem:[#allocation5 + $0xc] sm:$0xf]
    %v89 = vld [vmem:[#allocation5 + $0x10] sm:$0xf]
    %v90 = vld [vmem:[#allocation5 + $0x14] sm:$0xf]
    %v91 = vld [vmem:[#allocation5 + $0x18] sm:$0xf]
    %v92 = vld [vmem:[#allocation5 + $0x1c] sm:$0xf]
    %v93 = vld [vmem:[%s2] sm:$0x1]
    %v94 = vpack.c.bf16 %v84, %v84
    %v96 = vlaneseq
    %v97 = vshrl.u32 %v96, 7
    %v98 = vsub.s32 0, %v97
    %v99 = vrot.slane %v93, %v98
    %v109 = vunpack.c.l.b16 %v85
    %v110 = vunpack.c.l.b16 %v86
    %v111 = vunpack.c.l.b16 %v87
    %v112 = vunpack.c.l.b16 %v88
    %v113 = vunpack.c.l.b16 %v89
    %v114 = vunpack.c.l.b16 %v90
    %v115 = vunpack.c.l.b16 %v91
    %v116 = vunpack.c.l.b16 %v92
    %v117 = vpack.c.b16 %v110, %v109
    %v118 = vpack.c.b16 %v112, %v111
    %v119 = vpack.c.b16 %v114, %v113
    %v120 = vpack.c.b16 %v116, %v115
    %vm125 = vcmask 523264
    %v127 = vsel %vm125, %v94, 0
    %129 = vmatprep.subr.bf16.mxu0 0
    %130 = vmatpush1.bf16.msra.mxu0 %v117
    %131 = vmatprep.subr.bf16.mxu0 0
    %132 = vmatpush1.bf16.msra.mxu0 %v118
    %133 = vmatprep.subr.bf16.mxu0 0
    %134 = vmatpush1.bf16.msra.mxu0 %v119
    %135 = vmatprep.subr.bf16.mxu0 0
    %136 = vmatpush1.bf16.msra.mxu0 %v120
    %137 = vmatprep.subr.bf16.mxu0 0
    %138 = vmatpush1.bf16.msra.mxu0 0
    %139 = vmatprep.subr.bf16.mxu0 0
    %140 = vmatpush1.bf16.msra.mxu0 0
    %141 = vmatprep.subr.bf16.mxu0 0
    %142 = vmatpush1.bf16.msra.mxu0 0
    %143 = vmatprep.subr.bf16.mxu0 0
    %144 = vmatpush1.bf16.msra.mxu0 0
    %145 = vmatprep.subr.bf16.mxu0 0
    %146 = vmatpush1.bf16.msra.mxu0 0
    %147 = vmatprep.subr.bf16.mxu0 0
    %148 = vmatpush1.bf16.msra.mxu0 0
    %149 = vmatprep.subr.bf16.mxu0 0
    %150 = vmatpush1.bf16.msra.mxu0 0
    %151 = vmatprep.subr.bf16.mxu0 0
    %152 = vmatpush1.bf16.msra.mxu0 0
    %153 = vmatprep.subr.bf16.mxu0 0
    %154 = vmatpush1.bf16.msra.mxu0 0
    %155 = vmatprep.subr.bf16.mxu0 0
    %156 = vmatpush1.bf16.msra.mxu0 0
    %157 = vmatprep.subr.bf16.mxu0 0
    %158 = vmatpush1.bf16.msra.mxu0 0
    %159 = vmatprep.subr.bf16.mxu0 0
    %160 = vmatpush1.bf16.msra.mxu0 0
    %161 = vmatprep.mubr.bf16.mxu0 0
    %162 = vmatmul.mubr.bf16.gmra.mrb[0].mxu0 %v127
    %v163 = vpop.f32.mrb[0].mxu0
    %v164 = vadd.f32 %v99, %v163
    %v165 = vpop.f32.mrb[0].mxu0
    %v166 = vpop.f32.mrb[0].mxu0
    %v167 = vpop.f32.mrb[0].mxu0
    %168 = vdwg.mxu0
    %v169 = vtanh.pop %v164
    %v170 = vld [vmem:[#allocation7] sm:$0xf]
    %v171 = vld [vmem:[#allocation7 + $0x4] sm:$0xf]
    %v172 = vld [vmem:[#allocation7 + $0x8] sm:$0xf]
    %v173 = vld [vmem:[#allocation7 + $0xc] sm:$0xf]
    %v174 = vld [vmem:[#allocation7 + $0x10] sm:$0xf]
    %v175 = vld [vmem:[#allocation7 + $0x14] sm:$0xf]
    %v176 = vld [vmem:[#allocation7 + $0x18] sm:$0xf]
    %v177 = vld [vmem:[#allocation7 + $0x1c] sm:$0xf]
    %v178 = vld [vmem:[#allocation7 + $0x20] sm:$0xf]
    %v179 = vld [vmem:[#allocation7 + $0x24] sm:$0xf]
    %v180 = vld [vmem:[#allocation7 + $0x28] sm:$0xf]
    %v181 = vld [vmem:[#allocation7 + $0x2c] sm:$0xf]
    %v182 = vld [vmem:[#allocation7 + $0x30] sm:$0xf]
    %v183 = vld [vmem:[#allocation7 + $0x34] sm:$0xf]
    %v184 = vld [vmem:[#allocation7 + $0x38] sm:$0xf]
    %v185 = vld [vmem:[#allocation7 + $0x3c] sm:$0xf]
    %v186 = vld [vmem:[%s4] sm:$0x1]
    %v187 = vpack.c.bf16 %v169, %v169
    %v189 = vlaneseq
    %v190 = vshrl.u32 %v189, 7
    %v191 = vsub.s32 0, %v190
    %v192 = vrot.slane %v186, %v191
    %v210 = vunpack.c.l.b16 %v170
    %v211 = vunpack.c.l.b16 %v171
    %v212 = vunpack.c.l.b16 %v172
    %v213 = vunpack.c.l.b16 %v173
    %v214 = vunpack.c.l.b16 %v174
    %v215 = vunpack.c.l.b16 %v175
    %v216 = vunpack.c.l.b16 %v176
    %v217 = vunpack.c.l.b16 %v177
    %v218 = vunpack.c.l.b16 %v178
    %v219 = vunpack.c.l.b16 %v179
    %v220 = vunpack.c.l.b16 %v180
    %v221 = vunpack.c.l.b16 %v181
    %v222 = vunpack.c.l.b16 %v182
    %v223 = vunpack.c.l.b16 %v183
    %v224 = vunpack.c.l.b16 %v184
    %v225 = vunpack.c.l.b16 %v185
    %v226 = vpack.c.b16 %v211, %v210
    %v227 = vpack.c.b16 %v213, %v212
    %v228 = vpack.c.b16 %v215, %v214
    %v229 = vpack.c.b16 %v217, %v216
    %v230 = vpack.c.b16 %v219, %v218
    %v231 = vpack.c.b16 %v221, %v220
    %v232 = vpack.c.b16 %v223, %v222
    %v233 = vpack.c.b16 %v225, %v224
    %242 = vmatprep.subr.bf16.mxu0 0
    %243 = vmatpush1.bf16.msra.mxu0 %v226
    %244 = vmatprep.subr.bf16.mxu0 0
    %245 = vmatpush1.bf16.msra.mxu0 %v227
    %246 = vmatprep.subr.bf16.mxu0 0
    %247 = vmatpush1.bf16.msra.mxu0 %v228
    %248 = vmatprep.subr.bf16.mxu0 0
    %249 = vmatpush1.bf16.msra.mxu0 %v229
    %250 = vmatprep.subr.bf16.mxu0 0
    %251 = vmatpush1.bf16.msra.mxu0 %v230
    %252 = vmatprep.subr.bf16.mxu0 0
    %253 = vmatpush1.bf16.msra.mxu0 %v231
    %254 = vmatprep.subr.bf16.mxu0 0
    %255 = vmatpush1.bf16.msra.mxu0 %v232
    %256 = vmatprep.subr.bf16.mxu0 0
    %257 = vmatpush1.bf16.msra.mxu0 %v233
    %258 = vmatprep.subr.bf16.mxu0 0
    %259 = vmatpush1.bf16.msra.mxu0 0
    %260 = vmatprep.subr.bf16.mxu0 0
    %261 = vmatpush1.bf16.msra.mxu0 0
    %262 = vmatprep.subr.bf16.mxu0 0
    %263 = vmatpush1.bf16.msra.mxu0 0
    %264 = vmatprep.subr.bf16.mxu0 0
    %265 = vmatpush1.bf16.msra.mxu0 0
    %266 = vmatprep.subr.bf16.mxu0 0
    %267 = vmatpush1.bf16.msra.mxu0 0
    %268 = vmatprep.subr.bf16.mxu0 0
    %269 = vmatpush1.bf16.msra.mxu0 0
    %270 = vmatprep.subr.bf16.mxu0 0
    %271 = vmatpush1.bf16.msra.mxu0 0
    %272 = vmatprep.subr.bf16.mxu0 0
    %273 = vmatpush1.bf16.msra.mxu0 0
    %274 = vmatprep.mubr.bf16.mxu0 0
    %275 = vmatmul.mubr.bf16.gmra.mrb[0].mxu0 %v187
    %v276 = vpop.f32.mrb[0].mxu0
    %v277 = vadd.f32 %v192, %v276
    %v278 = vpop.f32.mrb[0].mxu0
    %v279 = vpop.f32.mrb[0].mxu0
    %v280 = vpop.f32.mrb[0].mxu0
    %281 = vdwg.mxu0
    %v282 = vtanh.pop %v277
    %v283 = vpack.c.bf16 %v282, %v282
    %v284 = vld [vmem:[#allocation8] sm:$0xf]
    %v285 = vld [vmem:[#allocation8 + $0x4] sm:$0xf]
    %v286 = vld [vmem:[#allocation8 + $0x8] sm:$0xf]
    %v287 = vld [vmem:[#allocation8 + $0xc] sm:$0xf]
    %v288 = vld [vmem:[#allocation8 + $0x10] sm:$0xf]
    %v289 = vld [vmem:[#allocation8 + $0x14] sm:$0xf]
    %v290 = vld [vmem:[#allocation8 + $0x18] sm:$0xf]
    %v291 = vld [vmem:[#allocation8 + $0x1c] sm:$0xf]
    %v292 = vld [vmem:[#allocation8 + $0x20] sm:$0xf]
    %v293 = vld [vmem:[#allocation8 + $0x24] sm:$0xf]
    %v294 = vld [vmem:[#allocation8 + $0x28] sm:$0xf]
    %v295 = vld [vmem:[#allocation8 + $0x2c] sm:$0xf]
    %v296 = vld [vmem:[#allocation8 + $0x30] sm:$0xf]
    %v297 = vld [vmem:[#allocation8 + $0x34] sm:$0xf]
    %v298 = vld [vmem:[#allocation8 + $0x38] sm:$0xf]
    %v299 = vld [vmem:[#allocation8 + $0x3c] sm:$0xf]
    %v300 = vld [vmem:[%s6] sm:$0x1]
    %v302 = vlaneseq
    %v303 = vshrl.u32 %v302, 7
    %v304 = vsub.s32 0, %v303
    %v305 = vrot.slane %v300, %v304
    %v323 = vunpack.c.l.b16 %v284
    %v324 = vunpack.c.l.b16 %v285
    %v325 = vunpack.c.l.b16 %v286
    %v326 = vunpack.c.l.b16 %v287
    %v327 = vunpack.c.l.b16 %v288
    %v328 = vunpack.c.l.b16 %v289
    %v329 = vunpack.c.l.b16 %v290
    %v330 = vunpack.c.l.b16 %v291
    %v331 = vunpack.c.l.b16 %v292
    %v332 = vunpack.c.l.b16 %v293
    %v333 = vunpack.c.l.b16 %v294
    %v334 = vunpack.c.l.b16 %v295
    %v335 = vunpack.c.l.b16 %v296
    %v336 = vunpack.c.l.b16 %v297
    %v337 = vunpack.c.l.b16 %v298
    %v338 = vunpack.c.l.b16 %v299
    %v339 = vpack.c.b16 %v324, %v323
    %v340 = vpack.c.b16 %v326, %v325
    %v341 = vpack.c.b16 %v328, %v327
    %v342 = vpack.c.b16 %v330, %v329
    %v343 = vpack.c.b16 %v332, %v331
    %v344 = vpack.c.b16 %v334, %v333
    %v345 = vpack.c.b16 %v336, %v335
    %v346 = vpack.c.b16 %v338, %v337
    %355 = vmatprep.subr.bf16.mxu0 0
    %356 = vmatpush1.bf16.msra.mxu0 %v339
    %357 = vmatprep.subr.bf16.mxu0 0
    %358 = vmatpush1.bf16.msra.mxu0 %v340
    %359 = vmatprep.subr.bf16.mxu0 0
    %360 = vmatpush1.bf16.msra.mxu0 %v341
    %361 = vmatprep.subr.bf16.mxu0 0
    %362 = vmatpush1.bf16.msra.mxu0 %v342
    %363 = vmatprep.subr.bf16.mxu0 0
    %364 = vmatpush1.bf16.msra.mxu0 %v343
    %365 = vmatprep.subr.bf16.mxu0 0
    %366 = vmatpush1.bf16.msra.mxu0 %v344
    %367 = vmatprep.subr.bf16.mxu0 0
    %368 = vmatpush1.bf16.msra.mxu0 %v345
    %369 = vmatprep.subr.bf16.mxu0 0
    %370 = vmatpush1.bf16.msra.mxu0 %v346
    %371 = vmatprep.subr.bf16.mxu0 0
    %372 = vmatpush1.bf16.msra.mxu0 0
    %373 = vmatprep.subr.bf16.mxu0 0
    %374 = vmatpush1.bf16.msra.mxu0 0
    %375 = vmatprep.subr.bf16.mxu0 0
    %376 = vmatpush1.bf16.msra.mxu0 0
    %377 = vmatprep.subr.bf16.mxu0 0
    %378 = vmatpush1.bf16.msra.mxu0 0
    %379 = vmatprep.subr.bf16.mxu0 0
    %380 = vmatpush1.bf16.msra.mxu0 0
    %381 = vmatprep.subr.bf16.mxu0 0
    %382 = vmatpush1.bf16.msra.mxu0 0
    %383 = vmatprep.subr.bf16.mxu0 0
    %384 = vmatpush1.bf16.msra.mxu0 0
    %385 = vmatprep.subr.bf16.mxu0 0
    %386 = vmatpush1.bf16.msra.mxu0 0
    %387 = vmatprep.mubr.bf16.mxu0 0
    %388 = vmatmul.mubr.bf16.gmra.mrb[0].mxu0 %v283
    %v389 = vpop.f32.mrb[0].mxu0
    %v390 = vadd.f32 %v305, %v389
    %v391 = vpop.f32.mrb[0].mxu0
    %v392 = vpop.f32.mrb[0].mxu0
    %v393 = vpop.f32.mrb[0].mxu0
    %394 = vdwg.mxu0
    %v395 = vsel %vm83, 1, 0
    %vm396 = vcmp.eq.s32.totalorder %v395, 1
    %v397 = vsel %vm396, %v390, -inf
    %vm398 = vcmask 1041408
    %v399 = vsel %vm398, %v397, -inf
    %400 = vmax.xlane.f32.xlu0 %v399
    %v401 = vpop.xlane.xlu0 %400
    %v402 = vsub.f32 %v397, %v401
    %v403 = vmul.f32 %v402, 1.442695
    %v404 = vpow.pop %v403
    %v405 = vsel %vm398, %v404, 0.0
    %406 = vadd.xlane.f32.xlu0 %v405
    %v407 = vpop.xlane.xlu0 %406
    %v408 = vrcp.pop %v407
    %v409 = vmul.f32 %v404, %v408
    %v410 = vsel %vm396, %v409, %v390
    %411 = vst [vmem:[#allocation10] sm:$0x3] %v410
    // Predicated region
    $region46: #{tpu_custom_call.1} parent=1 // pred_check
      _
    $region47: #{tpu_custom_call.1} parent=1 // pred_check_branch
      %413 = sbr.rel (0) target = $region49
    $region48: #{tpu_custom_call.1} parent=1 // pred_region
      %s415 = ssub.s32 32, 32
      %416 = vsyncadd [#allocation4], %s415
      %s418 = sshll.u32 [#allocation10], 4
      %s419 = int_to_ptr.vmem [resolvable:$true] %s418
      %421 = dma.vmem_to_hbm [thread:$0]  %s419, 32, %s7, [#allocation4]
    $region49: #{tpu_custom_call.1} parent=1 // pred_fallthru
      _
    // Predicated region
    $region50: #{tpu_custom_call.1} parent=1 // pred_check
      _
    $region51: #{tpu_custom_call.1} parent=1 // pred_check_branch
      %423 = sbr.rel (0) target = $region53
    $region52: #{tpu_custom_call.1} parent=1 // pred_region
      %424 = dma.done [#allocation4], 32
    $region53: #{tpu_custom_call.1} parent=1 // pred_fallthru
      _
    %425 = vsyncpa [#allocation3], 1
    %426 = vsyncpa [#allocation6], 1
    %427 = vsyncpa [#allocation9], 1
    %428 = vsyncpa [#allocation4], 1

</llo_original>
